<compile_context>
chip_gen: v6e
topology: v6e:2x2x1
jax: 0.10.0
libtpu: 0.0.40
codegen_flags: <defaults>
</compile_context>

<pallas_src>
import jax
import jax.numpy as jnp
import numpy as np
from jax.experimental import pallas as pl
from jax.experimental.pallas import tpu as pltpu

BN_EPS = 1e-5
NORM_EPS = 1e-12
HIDDEN = 32

VMEM_LIMIT_BYTES = 48 * 1024 * 1024   # safe on v7x (64 MiB physical VMEM)
VMEM_BUFFER_BUDGET = 32 * 1024 * 1024  # budget for per-step buffers/intermediates
HARD_TILE_CAP = 16384                  # keep DMAs & unrolled vector code reasonable


def contrastive_encoder_kernel(x_ref, w1_ref, b1_ref, w2_ref, b2_ref,
                               w3_ref, b3_ref, o_ref):
    x = x_ref[...]                                            # (TILE_B, in)

    # Layer 1 (Linear+BN folded), computed transposed so the batch tile is on
    # the lane axis:  h1 = W1' @ x^T  -> (32, TILE_B)
    h = jax.lax.dot_general(
        w1_ref[...], x, (((1,), (1,)), ((), ())),
        preferred_element_type=jnp.float32)
    h = jnp.maximum(h + b1_ref[...], 0.0)                     # ReLU (Dropout=id)

    # Layer 2 (Linear+BN folded) -> (32, TILE_B)
    h = jnp.dot(w2_ref[...], h, preferred_element_type=jnp.float32)
    h = jnp.maximum(h + b2_ref[...], 0.0)

    # Layer 3 -> (E, TILE_B)
    e = jnp.dot(w3_ref[...], h, preferred_element_type=jnp.float32) + b3_ref[...]

    # F.normalize(p=2, dim=1, eps=1e-12); feature axis is now axis 0.
    sumsq = jnp.sum(e * e, axis=0, keepdims=True)             # (1, TILE_B)
    inv = jax.lax.rsqrt(jnp.maximum(sumsq, NORM_EPS * NORM_EPS))
    o_ref[...] = e * inv


def _round_up(n, m):
    return ((n + m - 1) // m) * m


def _cdiv(a, b):
    return -(-a // b)


def _choose_tile(B, input_dim, E):
    """Pick the batch tile from the VMEM buffer budget.

    VMEM cost per batch row (f32):
      x double-buffer : 2 * round_up(input_dim, 128) * 4   (lane padding!)
      out double-buffer: 2 * round_up(E, 8) * 4
      intermediates   : ~ (2*HIDDEN + round_up(E, 8)) * 4
    """
    padded_in = _round_up(max(input_dim, 1), 128)
    padded_e = _round_up(max(E, 1), 8)
    per_row_bytes = 4 * (2 * padded_in + 2 * padded_e + 2 * HIDDEN + padded_e)

    cap = (VMEM_BUFFER_BUDGET // per_row_bytes) // 128 * 128
    cap = max(128, min(cap, HARD_TILE_CAP))

    # >=2 grid steps for non-trivial B so the "parallel" axis can shard across
    # v7x's two TensorCores; tiny batches just use one tile.
    min_grid = 2 if B > 256 else 1
    n_tiles = max(min_grid, _cdiv(B, cap))

    # Choose tile_b to minimize last-tile zero padding.
    tile_b = min(cap, _round_up(_cdiv(B, n_tiles), 128))
    b_pad = _round_up(B, tile_b)
    return tile_b, b_pad


def contrastive_encoder_forward(x, folded, *, transposed_output=False):
    """x: (B, input_dim) float32. folded: dict from fold_params().

    Returns (B, E) by default (module semantics). With transposed_output=True
    returns the kernel-native lane-dense (E, B) layout, skipping the host-side
    transpose (use when the consumer can take features-major directly).
    """
    B, input_dim = x.shape
    E = folded["w3"].shape[0]

    tile_b, b_pad = _choose_tile(B, input_dim, E)
    if b_pad != B:
        x = jnp.pad(x, ((0, b_pad - B), (0, 0)))
    grid = (b_pad // tile_b,)

    def const_spec(a):
        nd = a.ndim
        return pl.BlockSpec(a.shape, lambda i, _nd=nd: (0,) * _nd)

    flops = 2 * b_pad * (input_dim * HIDDEN + HIDDEN * HIDDEN + HIDDEN * E) + 4 * b_pad * E
    bytes_accessed = 4 * (
        b_pad * (input_dim + E)
        + folded["w1"].size + folded["b1"].size
        + folded["w2"].size + folded["b2"].size
        + folded["w3"].size + folded["b3"].size)

    out_t = pl.pallas_call(
        contrastive_encoder_kernel,
        out_shape=jax.ShapeDtypeStruct((E, b_pad), jnp.float32),
        grid=grid,
        in_specs=[
            pl.BlockSpec((tile_b, input_dim), lambda i: (i, 0)),
            const_spec(folded["w1"]), const_spec(folded["b1"]),
            const_spec(folded["w2"]), const_spec(folded["b2"]),
            const_spec(folded["w3"]), const_spec(folded["b3"]),
        ],
        out_specs=pl.BlockSpec((E, tile_b), lambda i: (0, i)),
        compiler_params=pltpu.CompilerParams(
            dimension_semantics=("parallel",),
            vmem_limit_bytes=VMEM_LIMIT_BYTES,
        ),
        cost_estimate=pl.CostEstimate(
            flops=flops, transcendentals=b_pad, bytes_accessed=bytes_accessed),
    )(x, folded["w1"], folded["b1"], folded["w2"], folded["b2"],
      folded["w3"], folded["b3"])

    out_t = out_t[:, :B]             # drop padded batch columns
    if transposed_output:
        return out_t                 # (E, B) lane-dense layout
    return out_t.T                   # (B, E) row layout expected by the module


def fold_params(p):
    """Fold BatchNorm running stats + Linear bias into the Linear weights (f32)."""
    s1 = p["g1"] / jnp.sqrt(p["v1"] + BN_EPS)                 # (32,)
    w1f = p["w1"] * s1[:, None]                               # (32, in)
    b1f = ((p["b1"] - p["m1"]) * s1 + p["be1"])[:, None]      # (32, 1)

    s2 = p["g2"] / jnp.sqrt(p["v2"] + BN_EPS)
    w2f = p["w2"] * s2[:, None]                               # (32, 32)
    b2f = ((p["b2"] - p["m2"]) * s2 + p["be2"])[:, None]      # (32, 1)

    return dict(w1=w1f, b1=b1f, w2=w2f, b2=b2f,
                w3=p["w3"], b3=p["b3"][:, None])


def init_params(key, input_dim, embedding_dim, hidden=HIDDEN):
    """PyTorch-style Linear init; BN params randomized (not identity) so the
    host-side fold is actually exercised by the correctness check."""
    ks = jax.random.split(key, 14)

    def linear(kw, kb, fan_in, fan_out):
        bound = 1.0 / np.sqrt(fan_in)
        w = jax.random.uniform(kw, (fan_out, fan_in), jnp.float32, -bound, bound)
        b = jax.random.uniform(kb, (fan_out,), jnp.float32, -bound, bound)
        return w, b

    w1, b1 = linear(ks[0], ks[1], input_dim, hidden)
    w2, b2 = linear(ks[2], ks[3], hidden, hidden)
    w3, b3 = linear(ks[4], ks[5], hidden, embedding_dim)

    def bn(kg, kb, km, kv):
        g = jax.random.uniform(kg, (hidden,), jnp.float32, 0.8, 1.2)
        be = 0.1 * jax.random.normal(kb, (hidden,), jnp.float32)
        m = 0.1 * jax.random.normal(km, (hidden,), jnp.float32)
        v = jax.random.uniform(kv, (hidden,), jnp.float32, 0.5, 1.5)
        return g, be, m, v

    g1, be1, m1, v1 = bn(ks[6], ks[7], ks[8], ks[9])
    g2, be2, m2, v2 = bn(ks[10], ks[11], ks[12], ks[13])

    return dict(w1=w1, b1=b1, g1=g1, be1=be1, m1=m1, v1=v1,
                w2=w2, b2=b2, g2=g2, be2=be2, m2=m2, v2=v2,
                w3=w3, b3=b3)


def reference_forward(x, p):
    """Pure-JAX reference of the eval-mode PyTorch forward (unfolded)."""
    h = x @ p["w1"].T + p["b1"]
    h = (h - p["m1"]) / jnp.sqrt(p["v1"] + BN_EPS) * p["g1"] + p["be1"]
    h = jnp.maximum(h, 0.0)
    h = h @ p["w2"].T + p["b2"]
    h = (h - p["m2"]) / jnp.sqrt(p["v2"] + BN_EPS) * p["g2"] + p["be2"]
    h = jnp.maximum(h, 0.0)
    e = h @ p["w3"].T + p["b3"]
    n = jnp.sqrt(jnp.sum(e * e, axis=1, keepdims=True))
    return e / jnp.maximum(n, NORM_EPS)


if __name__ == "__main__":
    key = jax.random.PRNGKey(0)
    k_param, k_x1, k_x2 = jax.random.split(key, 3)

    input_dim, embedding_dim = 16, 8
    raw = init_params(k_param, input_dim, embedding_dim)
    folded = fold_params(raw)

    # Small single-tile case (grid = 1).
    batch = 8
    x = jax.random.normal(k_x1, (batch, input_dim), jnp.float32)
    out = jax.block_until_ready(contrastive_encoder_forward(x, folded))
    ref = reference_forward(x, raw)
    np.testing.assert_allclose(np.asarray(out), np.asarray(ref), rtol=1e-5, atol=1e-5)
    np.testing.assert_allclose(
        np.linalg.norm(np.asarray(out), axis=1), np.ones(batch), rtol=1e-5, atol=1e-5)

    # Multi-tile case (exercises grid >= 2 + last-tile padding) and the
    # transposed (E, B) output path.
    batch2 = 300
    x2 = jax.random.normal(k_x2, (batch2, input_dim), jnp.float32)
    out2 = jax.block_until_ready(contrastive_encoder_forward(x2, folded))
    ref2 = reference_forward(x2, raw)
    np.testing.assert_allclose(np.asarray(out2), np.asarray(ref2), rtol=1e-5, atol=1e-5)

    out2_t = jax.block_until_ready(
        contrastive_encoder_forward(x2, folded, transposed_output=True))
    np.testing.assert_allclose(np.asarray(out2_t), np.asarray(ref2).T,
                               rtol=1e-5, atol=1e-5)

    print("KERNEL_OK")
</pallas_src>

<mosaic_0001>
module attributes {stable_mosaic.version = 11 : i64} {
  func.func @contrastive_encoder_kernel(%arg0: i32, %arg1: memref<128x16xf32, #tpu.memory_space<vmem>>, %arg2: memref<32x16xf32, #tpu.memory_space<vmem>>, %arg3: memref<32x1xf32, #tpu.memory_space<vmem>>, %arg4: memref<32x32xf32, #tpu.memory_space<vmem>>, %arg5: memref<32x1xf32, #tpu.memory_space<vmem>>, %arg6: memref<8x32xf32, #tpu.memory_space<vmem>>, %arg7: memref<8x1xf32, #tpu.memory_space<vmem>>, %arg8: memref<8x128xf32, #tpu.memory_space<vmem>>) attributes {dimension_semantics = [#tpu.dimension_semantics<parallel>], iteration_bounds = array<i64: 1>, scalar_prefetch = 0 : i64, scratch_operands = 0 : i64, tpu.core_type = #tpu.core_type<tc>, window_params = [{transform_indices = @transform_0, window_bounds = array<i64: 128, 16>}, {pipeline_mode = #tpu.pipeline_mode<synchronous>, transform_indices = @transform_1, window_bounds = array<i64: 32, 16>}, {pipeline_mode = #tpu.pipeline_mode<synchronous>, transform_indices = @transform_2, window_bounds = array<i64: 32, 1>}, {pipeline_mode = #tpu.pipeline_mode<synchronous>, transform_indices = @transform_3, window_bounds = array<i64: 32, 32>}, {pipeline_mode = #tpu.pipeline_mode<synchronous>, transform_indices = @transform_4, window_bounds = array<i64: 32, 1>}, {pipeline_mode = #tpu.pipeline_mode<synchronous>, transform_indices = @transform_5, window_bounds = array<i64: 8, 32>}, {pipeline_mode = #tpu.pipeline_mode<synchronous>, transform_indices = @transform_6, window_bounds = array<i64: 8, 1>}, {transform_indices = @transform_7, window_bounds = array<i64: 8, 128>}]} {
    %c0 = arith.constant 0 : index
    %c0_0 = arith.constant 0 : index
    %0 = vector.load %arg1[%c0, %c0_0] : memref<128x16xf32, #tpu.memory_space<vmem>>, vector<128x16xf32>
    %c0_1 = arith.constant 0 : index
    %c0_2 = arith.constant 0 : index
    %1 = vector.load %arg2[%c0_1, %c0_2] : memref<32x16xf32, #tpu.memory_space<vmem>>, vector<32x16xf32>
    %cst = arith.constant dense<0.000000e+00> : vector<32x128xf32>
    %2 = tpu.matmul %1, %0, %cst {dimension_numbers = #tpu.dot_dimension_numbers<[1], [1], [0], [0], [0, 0, 1, 0], [], []>} : vector<32x16xf32>, vector<128x16xf32>, vector<32x128xf32> -> vector<32x128xf32>
    %c0_3 = arith.constant 0 : index
    %c0_4 = arith.constant 0 : index
    %3 = vector.load %arg3[%c0_3, %c0_4] : memref<32x1xf32, #tpu.memory_space<vmem>>, vector<32x1xf32>
    %4 = vector.broadcast %3 : vector<32x1xf32> to vector<32x128xf32>
    %5 = arith.addf %2, %4 : vector<32x128xf32>
    %cst_5 = arith.constant 0.000000e+00 : f32
    %6 = vector.broadcast %cst_5 : f32 to vector<32x128xf32>
    %7 = arith.maximumf %5, %6 : vector<32x128xf32>
    %c0_6 = arith.constant 0 : index
    %c0_7 = arith.constant 0 : index
    %8 = vector.load %arg4[%c0_6, %c0_7] : memref<32x32xf32, #tpu.memory_space<vmem>>, vector<32x32xf32>
    %cst_8 = arith.constant dense<0.000000e+00> : vector<32x128xf32>
    %9 = tpu.matmul %8, %7, %cst_8 {dimension_numbers = #tpu.dot_dimension_numbers<[1], [0], [0], [1], [0, 0, 1, 1], [], []>} : vector<32x32xf32>, vector<32x128xf32>, vector<32x128xf32> -> vector<32x128xf32>
    %c0_9 = arith.constant 0 : index
    %c0_10 = arith.constant 0 : index
    %10 = vector.load %arg5[%c0_9, %c0_10] : memref<32x1xf32, #tpu.memory_space<vmem>>, vector<32x1xf32>
    %11 = vector.broadcast %10 : vector<32x1xf32> to vector<32x128xf32>
    %12 = arith.addf %9, %11 : vector<32x128xf32>
    %cst_11 = arith.constant 0.000000e+00 : f32
    %13 = vector.broadcast %cst_11 : f32 to vector<32x128xf32>
    %14 = arith.maximumf %12, %13 : vector<32x128xf32>
    %c0_12 = arith.constant 0 : index
    %c0_13 = arith.constant 0 : index
    %15 = vector.load %arg6[%c0_12, %c0_13] : memref<8x32xf32, #tpu.memory_space<vmem>>, vector<8x32xf32>
    %cst_14 = arith.constant dense<0.000000e+00> : vector<8x128xf32>
    %16 = tpu.matmul %15, %14, %cst_14 {dimension_numbers = #tpu.dot_dimension_numbers<[1], [0], [0], [1], [0, 0, 1, 1], [], []>} : vector<8x32xf32>, vector<32x128xf32>, vector<8x128xf32> -> vector<8x128xf32>
    %c0_15 = arith.constant 0 : index
    %c0_16 = arith.constant 0 : index
    %17 = vector.load %arg7[%c0_15, %c0_16] : memref<8x1xf32, #tpu.memory_space<vmem>>, vector<8x1xf32>
    %18 = vector.broadcast %17 : vector<8x1xf32> to vector<8x128xf32>
    %19 = arith.addf %16, %18 : vector<8x128xf32>
    %20 = arith.mulf %19, %19 : vector<8x128xf32>
    %cst_17 = arith.constant dense<0.000000e+00> : vector<128xf32>
    %21 = vector.multi_reduction <add>, %20, %cst_17 [0] : vector<8x128xf32> to vector<128xf32>
    %22 = vector.shape_cast %21 : vector<128xf32> to vector<1x128xf32>
    %cst_18 = arith.constant 1.000000e-24 : f32
    %23 = vector.broadcast %cst_18 : f32 to vector<1x128xf32>
    %24 = arith.maximumf %22, %23 : vector<1x128xf32>
    %25 = math.rsqrt %24 : vector<1x128xf32>
    %26 = vector.broadcast %25 : vector<1x128xf32> to vector<8x128xf32>
    %27 = arith.mulf %19, %26 : vector<8x128xf32>
    %c0_19 = arith.constant 0 : index
    %c0_20 = arith.constant 0 : index
    %28 = vector.load %arg8[%c0_19, %c0_20] : memref<8x128xf32, #tpu.memory_space<vmem>>, vector<8x128xf32>
    tpu.vector_store %arg8[%c0_19, %c0_20], %27 {strides = array<i32>} : memref<8x128xf32, #tpu.memory_space<vmem>>, vector<8x128xf32>,
    return
  }
  func.func @transform_0(%arg0: i32) -> (i32, i32) {
    %c0_i32 = arith.constant 0 : i32
    %c0_i32_0 = arith.constant 0 : i32
    return %arg0, %c0_i32 : i32, i32
  }
  func.func @transform_1(%arg0: i32) -> (i32, i32) {
    %c0_i32 = arith.constant 0 : i32
    %c0_i32_0 = arith.constant 0 : i32
    %c0_i32_1 = arith.constant 0 : i32
    return %c0_i32, %c0_i32_0 : i32, i32
  }
  func.func @transform_2(%arg0: i32) -> (i32, i32) {
    %c0_i32 = arith.constant 0 : i32
    %c0_i32_0 = arith.constant 0 : i32
    %c0_i32_1 = arith.constant 0 : i32
    return %c0_i32, %c0_i32_0 : i32, i32
  }
  func.func @transform_3(%arg0: i32) -> (i32, i32) {
    %c0_i32 = arith.constant 0 : i32
    %c0_i32_0 = arith.constant 0 : i32
    %c0_i32_1 = arith.constant 0 : i32
    return %c0_i32, %c0_i32_0 : i32, i32
  }
  func.func @transform_4(%arg0: i32) -> (i32, i32) {
    %c0_i32 = arith.constant 0 : i32
    %c0_i32_0 = arith.constant 0 : i32
    %c0_i32_1 = arith.constant 0 : i32
    return %c0_i32, %c0_i32_0 : i32, i32
  }
  func.func @transform_5(%arg0: i32) -> (i32, i32) {
    %c0_i32 = arith.constant 0 : i32
    %c0_i32_0 = arith.constant 0 : i32
    %c0_i32_1 = arith.constant 0 : i32
    return %c0_i32, %c0_i32_0 : i32, i32
  }
  func.func @transform_6(%arg0: i32) -> (i32, i32) {
    %c0_i32 = arith.constant 0 : i32
    %c0_i32_0 = arith.constant 0 : i32
    %c0_i32_1 = arith.constant 0 : i32
    return %c0_i32, %c0_i32_0 : i32, i32
  }
  func.func @transform_7(%arg0: i32) -> (i32, i32) {
    %c0_i32 = arith.constant 0 : i32
    %c0_i32_0 = arith.constant 0 : i32
    return %c0_i32, %arg0 : i32, i32
  }
}

</mosaic_0001>

<llo_original>
// kernel: tpu_custom_call.1
$region0: #{tpu_custom_call.1}
  #allocation0 [shape = 'u32[]', space=smem, size = 0x4, offset = 0x4, fixed_abs, tag = 'smem constant byte address 0x4 - core index']
  #allocation1 [shape = 'u32[144,128]{1,0:T(1,128)}', space=vmem, size = 0x12000, scoped, tag = 'internal scratch']
  %s0 = inlined_call_operand.vmem [shape: f32[128,16], index: 0, kind: input, shape index: {}]
  %s1 = inlined_call_operand.vmem [shape: f32[32,16], index: 1, kind: input, shape index: {}]
  %s2 = inlined_call_operand.vmem [shape: f32[32,1], index: 2, kind: input, shape index: {}]
  %s3 = inlined_call_operand.vmem [shape: f32[32,32], index: 3, kind: input, shape index: {}]
  %s4 = inlined_call_operand.vmem [shape: f32[32,1], index: 4, kind: input, shape index: {}]
  %s5 = inlined_call_operand.vmem [shape: f32[8,32], index: 5, kind: input, shape index: {}]
  %s6 = inlined_call_operand.vmem [shape: f32[8,1], index: 6, kind: input, shape index: {}]
  %s7 = inlined_call_operand.hbm [shape: f32[8,128], index: 7, kind: output, shape index: {}]
  %s8 = sld [smem:[#allocation0]]
  $region38: #{tpu_custom_call.1} parent=0
    _
  %s10 = ssub.s32 1, %s8
  %s11 = scalar_select 0, %s10, %s8
  $region1: #{tpu_custom_call.1} parent=0
    #allocation2 [shape = 'u8[4096]{0}', space=vmem, size = 0x1000, scoped, tag = 'output window, operand 0, single buffered']
    #allocation3 [shape = 's32[1]{0}', space=sflag, size = 0x4, scoped, tag = 'scoped memory for tpu_custom_call.1']
    %12 = vsyncpa [#allocation3], 0
    // Predicated region
    $region2: #{tpu_custom_call.1} parent=1 // pred_check
      _
    $region3: #{tpu_custom_call.1} parent=1 // pred_check_branch
      %14 = sbr.rel (0) target = $region5
    $region4: #{tpu_custom_call.1} parent=1 // pred_region
      _
    $region5: #{tpu_custom_call.1} parent=1 // pred_fallthru
      _
    // Predicated region
    $region6: #{tpu_custom_call.1} parent=1 // pred_check
      _
    $region7: #{tpu_custom_call.1} parent=1 // pred_check_branch
      %16 = sbr.rel (0) target = $region9
    $region8: #{tpu_custom_call.1} parent=1 // pred_region
      _
    $region9: #{tpu_custom_call.1} parent=1 // pred_fallthru
      _
    // Predicated region
    $region10: #{tpu_custom_call.1} parent=1 // pred_check
      _
    $region11: #{tpu_custom_call.1} parent=1 // pred_check_branch
      %18 = sbr.rel (0) target = $region13
    $region12: #{tpu_custom_call.1} parent=1 // pred_region
      _
    $region13: #{tpu_custom_call.1} parent=1 // pred_fallthru
      _
    // Predicated region
    $region14: #{tpu_custom_call.1} parent=1 // pred_check
      _
    $region15: #{tpu_custom_call.1} parent=1 // pred_check_branch
      %20 = sbr.rel (0) target = $region17
    $region16: #{tpu_custom_call.1} parent=1 // pred_region
      _
    $region17: #{tpu_custom_call.1} parent=1 // pred_fallthru
      _
    // Predicated region
    $region18: #{tpu_custom_call.1} parent=1 // pred_check
      _
    $region19: #{tpu_custom_call.1} parent=1 // pred_check_branch
      %22 = sbr.rel (0) target = $region21
    $region20: #{tpu_custom_call.1} parent=1 // pred_region
      _
    $region21: #{tpu_custom_call.1} parent=1 // pred_fallthru
      _
    // Predicated region
    $region22: #{tpu_custom_call.1} parent=1 // pred_check
      _
    $region23: #{tpu_custom_call.1} parent=1 // pred_check_branch
      %24 = sbr.rel (0) target = $region25
    $region24: #{tpu_custom_call.1} parent=1 // pred_region
      _
    $region25: #{tpu_custom_call.1} parent=1 // pred_fallthru
      _
    // Predicated region
    $region26: #{tpu_custom_call.1} parent=1 // pred_check
      _
    $region27: #{tpu_custom_call.1} parent=1 // pred_check_branch
      %26 = sbr.rel (0) target = $region29
    $region28: #{tpu_custom_call.1} parent=1 // pred_region
      _
    $region29: #{tpu_custom_call.1} parent=1 // pred_fallthru
      _
    %v27 = vld [vmem:[%s0] sm:$0xff]
    %v28 = vld [vmem:[%s0 + $0x8] sm:$0xff]
    %v29 = vld [vmem:[%s0 + $0x10] sm:$0xff]
    %v30 = vld [vmem:[%s0 + $0x18] sm:$0xff]
    %v31 = vld [vmem:[%s0 + $0x20] sm:$0xff]
    %v32 = vld [vmem:[%s0 + $0x28] sm:$0xff]
    %v33 = vld [vmem:[%s0 + $0x30] sm:$0xff]
    %v34 = vld [vmem:[%s0 + $0x38] sm:$0xff]
    %v35 = vld [vmem:[%s0 + $0x40] sm:$0xff]
    %v36 = vld [vmem:[%s0 + $0x48] sm:$0xff]
    %v37 = vld [vmem:[%s0 + $0x50] sm:$0xff]
    %v38 = vld [vmem:[%s0 + $0x58] sm:$0xff]
    %v39 = vld [vmem:[%s0 + $0x60] sm:$0xff]
    %v40 = vld [vmem:[%s0 + $0x68] sm:$0xff]
    %v41 = vld [vmem:[%s0 + $0x70] sm:$0xff]
    %v42 = vld [vmem:[%s0 + $0x78] sm:$0xff]
    %v43 = vld [vmem:[%s1] sm:$0xff]
    %v44 = vld [vmem:[%s1 + $0x8] sm:$0xff]
    %v45 = vld [vmem:[%s1 + $0x10] sm:$0xff]
    %v46 = vld [vmem:[%s1 + $0x18] sm:$0xff]
    %v47 = vld [vmem:[%s2] sm:$0xff]
    %v48 = vld [vmem:[%s2 + $0x8] sm:$0xff]
    %v49 = vld [vmem:[%s2 + $0x10] sm:$0xff]
    %v50 = vld [vmem:[%s2 + $0x18] sm:$0xff]
    %52 = vset.pattern.permute.xlu0 0
    %53 = vperm.xlu0 %52, %v47
    %v54 = vpop.permute.xlu0 %53
    %57 = vset.pattern.permute.xlu0 0
    %58 = vperm.xlu0 %57, %v48
    %v59 = vpop.permute.xlu0 %58
    %62 = vset.pattern.permute.xlu0 0
    %63 = vperm.xlu0 %62, %v49
    %v64 = vpop.permute.xlu0 %63
    %67 = vset.pattern.permute.xlu0 0
    %68 = vperm.xlu0 %67, %v50
    %v69 = vpop.permute.xlu0 %68
    %vm71 = vcmask 130048
    %v73 = vsel %vm71, %v43, 0
    %v76 = vsel %vm71, %v44, 0
    %v79 = vsel %vm71, %v45, 0
    %v82 = vsel %vm71, %v46, 0
    %v85 = vsel %vm71, %v27, 0
    %v88 = vsel %vm71, %v28, 0
    %v91 = vsel %vm71, %v29, 0
    %v94 = vsel %vm71, %v30, 0
    %v97 = vsel %vm71, %v31, 0
    %v100 = vsel %vm71, %v32, 0
    %v103 = vsel %vm71, %v33, 0
    %v106 = vsel %vm71, %v34, 0
    %v109 = vsel %vm71, %v35, 0
    %v112 = vsel %vm71, %v36, 0
    %v115 = vsel %vm71, %v37, 0
    %v118 = vsel %vm71, %v38, 0
    %v121 = vsel %vm71, %v39, 0
    %v124 = vsel %vm71, %v40, 0
    %v127 = vsel %vm71, %v41, 0
    %v130 = vsel %vm71, %v42, 0
    %132 = vmatprep.subr.mxu0 0.0
    %133 = vmatpush1.xpose.msra.mxu0 %v130
    %134 = vmatprep.subr.mxu0 0.0
    %135 = vmatpush1.xpose.msra.mxu0 %v127
    %136 = vmatprep.subr.mxu0 0.0
    %137 = vmatpush1.xpose.msra.mxu0 %v124
    %138 = vmatprep.subr.mxu0 0.0
    %139 = vmatpush1.xpose.msra.mxu0 %v121
    %140 = vmatprep.subr.mxu0 0.0
    %141 = vmatpush1.xpose.msra.mxu0 %v118
    %142 = vmatprep.subr.mxu0 0.0
    %143 = vmatpush1.xpose.msra.mxu0 %v115
    %144 = vmatprep.subr.mxu0 0.0
    %145 = vmatpush1.xpose.msra.mxu0 %v112
    %146 = vmatprep.subr.mxu0 0.0
    %147 = vmatpush1.xpose.msra.mxu0 %v109
    %148 = vmatprep.subr.mxu0 0.0
    %149 = vmatpush1.xpose.msra.mxu0 %v106
    %150 = vmatprep.subr.mxu0 0.0
    %151 = vmatpush1.xpose.msra.mxu0 %v103
    %152 = vmatprep.subr.mxu0 0.0
    %153 = vmatpush1.xpose.msra.mxu0 %v100
    %154 = vmatprep.subr.mxu0 0.0
    %155 = vmatpush1.xpose.msra.mxu0 %v97
    %156 = vmatprep.subr.mxu0 0.0
    %157 = vmatpush1.xpose.msra.mxu0 %v94
    %158 = vmatprep.subr.mxu0 0.0
    %159 = vmatpush1.xpose.msra.mxu0 %v91
    %160 = vmatprep.subr.mxu0 0.0
    %161 = vmatpush1.xpose.msra.mxu0 %v88
    %162 = vmatprep.subr.mxu0 0.0
    %163 = vmatpush1.xpose.msra.mxu0 %v85
    %164 = vmatprep.subr.mxu0 0.0
    %165 = vmatpush2.xpose.msra.mxu0 0.0
    %166 = vmatprep.subr.mxu0 0.0
    %167 = vmatpush2.xpose.msra.mxu0 0.0
    %168 = vmatprep.subr.mxu0 0.0
    %169 = vmatpush2.xpose.msra.mxu0 0.0
    %170 = vmatprep.subr.mxu0 0.0
    %171 = vmatpush2.xpose.msra.mxu0 0.0
    %172 = vmatprep.subr.mxu0 0.0
    %173 = vmatpush2.xpose.msra.mxu0 0.0
    %174 = vmatprep.subr.mxu0 0.0
    %175 = vmatpush2.xpose.msra.mxu0 0.0
    %176 = vmatprep.subr.mxu0 0.0
    %177 = vmatpush2.xpose.msra.mxu0 0.0
    %178 = vmatprep.subr.mxu0 0.0
    %179 = vmatpush2.xpose.msra.mxu0 0.0
    %180 = vmatprep.subr.mxu0 0.0
    %181 = vmatpush2.xpose.msra.mxu0 0.0
    %182 = vmatprep.subr.mxu0 0.0
    %183 = vmatpush2.xpose.msra.mxu0 0.0
    %184 = vmatprep.subr.mxu0 0.0
    %185 = vmatpush2.xpose.msra.mxu0 0.0
    %186 = vmatprep.subr.mxu0 0.0
    %187 = vmatpush2.xpose.msra.mxu0 0.0
    %188 = vmatprep.subr.mxu0 0.0
    %189 = vmatpush2.xpose.msra.mxu0 0.0
    %190 = vmatprep.subr.mxu0 0.0
    %191 = vmatpush2.xpose.msra.mxu0 0.0
    %192 = vmatprep.subr.mxu0 0.0
    %193 = vmatpush2.xpose.msra.mxu0 0.0
    %194 = vmatprep.subr.mxu0 0.0
    %195 = vmatpush2.xpose.msra.mxu0 0.0
    %196 = vmatprep.mubr.f32.mxu0 0.0
    %197 = vmatmul.mubr.f32.gmra.mxu0 %v73
    %v198 = vpop.f32.mrf.mxu0
    %v199 = vadd.f32 %v54, %v198
    %v200 = vpop.f32.mrf.mxu0
    %201 = vmatprep.mubr.f32.mxu0 0.0
    %202 = vmatmul.mubr.f32.gmra.mxu0 %v76
    %v203 = vpop.f32.mrf.mxu0
    %v204 = vadd.f32 %v59, %v203
    %v205 = vpop.f32.mrf.mxu0
    %206 = vmatprep.mubr.f32.mxu0 0.0
    %207 = vmatmul.mubr.f32.gmra.mxu0 %v79
    %v208 = vpop.f32.mrf.mxu0
    %v209 = vadd.f32 %v64, %v208
    %v210 = vpop.f32.mrf.mxu0
    %211 = vmatprep.mubr.f32.mxu0 0.0
    %212 = vmatmul.mubr.f32.gmra.mxu0 %v82
    %v213 = vpop.f32.mrf.mxu0
    %v214 = vadd.f32 %v69, %v213
    %v215 = vpop.f32.mrf.mxu0
    %216 = vdwg.mxu0
    %v217 = vmax.f32 %v199, 0.0
    %v218 = vmax.f32 %v204, 0.0
    %v219 = vmax.f32 %v209, 0.0
    %v220 = vmax.f32 %v214, 0.0
    %v221 = vld [vmem:[%s3] sm:$0xff]
    %v222 = vld [vmem:[%s3 + $0x8] sm:$0xff]
    %v223 = vld [vmem:[%s3 + $0x10] sm:$0xff]
    %v224 = vld [vmem:[%s3 + $0x18] sm:$0xff]
    %v225 = vld [vmem:[%s4] sm:$0xff]
    %v226 = vld [vmem:[%s4 + $0x8] sm:$0xff]
    %v227 = vld [vmem:[%s4 + $0x10] sm:$0xff]
    %v228 = vld [vmem:[%s4 + $0x18] sm:$0xff]
    %230 = vset.pattern.permute.xlu0 0
    %231 = vperm.xlu0 %230, %v225
    %v232 = vpop.permute.xlu0 %231
    %235 = vset.pattern.permute.xlu0 0
    %236 = vperm.xlu0 %235, %v226
    %v237 = vpop.permute.xlu0 %236
    %240 = vset.pattern.permute.xlu0 0
    %241 = vperm.xlu0 %240, %v227
    %v242 = vpop.permute.xlu0 %241
    %245 = vset.pattern.permute.xlu0 0
    %246 = vperm.xlu0 %245, %v228
    %v247 = vpop.permute.xlu0 %246
    %vm249 = vcmask 261120
    %v251 = vsel %vm249, %v221, 0
    %v254 = vsel %vm249, %v222, 0
    %v257 = vsel %vm249, %v223, 0
    %v260 = vsel %vm249, %v224, 0
    %262 = vmatprep.subr.mxu0 0.0
    %263 = vmatpush1.msra.mxu0 0.0
    %264 = vmatprep.subr.mxu0 0.0
    %265 = vmatpush1.msra.mxu0 0.0
    %266 = vmatprep.subr.mxu0 0.0
    %267 = vmatpush1.msra.mxu0 0.0
    %268 = vmatprep.subr.mxu0 0.0
    %269 = vmatpush1.msra.mxu0 0.0
    %270 = vmatprep.subr.mxu0 0.0
    %271 = vmatpush1.msra.mxu0 0.0
    %272 = vmatprep.subr.mxu0 0.0
    %273 = vmatpush1.msra.mxu0 0.0
    %274 = vmatprep.subr.mxu0 0.0
    %275 = vmatpush1.msra.mxu0 0.0
    %276 = vmatprep.subr.mxu0 0.0
    %277 = vmatpush1.msra.mxu0 0.0
    %278 = vmatprep.subr.mxu0 0.0
    %279 = vmatpush1.msra.mxu0 0.0
    %280 = vmatprep.subr.mxu0 0.0
    %281 = vmatpush1.msra.mxu0 0.0
    %282 = vmatprep.subr.mxu0 0.0
    %283 = vmatpush1.msra.mxu0 0.0
    %284 = vmatprep.subr.mxu0 0.0
    %285 = vmatpush1.msra.mxu0 0.0
    %286 = vmatprep.subr.mxu0 0.0
    %287 = vmatpush1.msra.mxu0 %v220
    %288 = vmatprep.subr.mxu0 0.0
    %289 = vmatpush1.msra.mxu0 %v219
    %290 = vmatprep.subr.mxu0 0.0
    %291 = vmatpush1.msra.mxu0 %v218
    %292 = vmatprep.subr.mxu0 0.0
    %293 = vmatpush1.msra.mxu0 %v217
    %294 = vmatprep.subr.mxu0 0.0
    %295 = vmatpush2.msra.mxu0 0.0
    %296 = vmatprep.subr.mxu0 0.0
    %297 = vmatpush2.msra.mxu0 0.0
    %298 = vmatprep.subr.mxu0 0.0
    %299 = vmatpush2.msra.mxu0 0.0
    %300 = vmatprep.subr.mxu0 0.0
    %301 = vmatpush2.msra.mxu0 0.0
    %302 = vmatprep.subr.mxu0 0.0
    %303 = vmatpush2.msra.mxu0 0.0
    %304 = vmatprep.subr.mxu0 0.0
    %305 = vmatpush2.msra.mxu0 0.0
    %306 = vmatprep.subr.mxu0 0.0
    %307 = vmatpush2.msra.mxu0 0.0
    %308 = vmatprep.subr.mxu0 0.0
    %309 = vmatpush2.msra.mxu0 0.0
    %310 = vmatprep.subr.mxu0 0.0
    %311 = vmatpush2.msra.mxu0 0.0
    %312 = vmatprep.subr.mxu0 0.0
    %313 = vmatpush2.msra.mxu0 0.0
    %314 = vmatprep.subr.mxu0 0.0
    %315 = vmatpush2.msra.mxu0 0.0
    %316 = vmatprep.subr.mxu0 0.0
    %317 = vmatpush2.msra.mxu0 0.0
    %318 = vmatprep.subr.mxu0 0.0
    %319 = vmatpush2.msra.mxu0 0.0
    %320 = vmatprep.subr.mxu0 0.0
    %321 = vmatpush2.msra.mxu0 0.0
    %322 = vmatprep.subr.mxu0 0.0
    %323 = vmatpush2.msra.mxu0 0.0
    %324 = vmatprep.subr.mxu0 0.0
    %325 = vmatpush2.msra.mxu0 0.0
    %326 = vmatprep.mubr.f32.mxu0 0.0
    %327 = vmatmul.mubr.f32.gmra.mxu0 %v251
    %v328 = vpop.f32.mrf.mxu0
    %v329 = vadd.f32 %v232, %v328
    %v330 = vpop.f32.mrf.mxu0
    %331 = vmatprep.mubr.f32.mxu0 0.0
    %332 = vmatmul.mubr.f32.gmra.mxu0 %v254
    %v333 = vpop.f32.mrf.mxu0
    %v334 = vadd.f32 %v237, %v333
    %v335 = vpop.f32.mrf.mxu0
    %336 = vmatprep.mubr.f32.mxu0 0.0
    %337 = vmatmul.mubr.f32.gmra.mxu0 %v257
    %v338 = vpop.f32.mrf.mxu0
    %v339 = vadd.f32 %v242, %v338
    %v340 = vpop.f32.mrf.mxu0
    %341 = vmatprep.mubr.f32.mxu0 0.0
    %342 = vmatmul.mubr.f32.gmra.mxu0 %v260
    %v343 = vpop.f32.mrf.mxu0
    %v344 = vadd.f32 %v247, %v343
    %v345 = vpop.f32.mrf.mxu0
    %346 = vdwg.mxu0
    %v347 = vmax.f32 %v329, 0.0
    %v348 = vmax.f32 %v334, 0.0
    %v349 = vmax.f32 %v339, 0.0
    %v350 = vmax.f32 %v344, 0.0
    %v351 = vld [vmem:[%s5] sm:$0xff]
    %v352 = vld [vmem:[%s6] sm:$0xff]
    %354 = vset.pattern.permute.xlu0 0
    %355 = vperm.xlu0 %354, %v352
    %v356 = vpop.permute.xlu0 %355
    %v359 = vsel %vm249, %v351, 0
    %361 = vmatprep.subr.mxu0 0.0
    %362 = vmatpush1.msra.mxu0 0.0
    %363 = vmatprep.subr.mxu0 0.0
    %364 = vmatpush1.msra.mxu0 0.0
    %365 = vmatprep.subr.mxu0 0.0
    %366 = vmatpush1.msra.mxu0 0.0
    %367 = vmatprep.subr.mxu0 0.0
    %368 = vmatpush1.msra.mxu0 0.0
    %369 = vmatprep.subr.mxu0 0.0
    %370 = vmatpush1.msra.mxu0 0.0
    %371 = vmatprep.subr.mxu0 0.0
    %372 = vmatpush1.msra.mxu0 0.0
    %373 = vmatprep.subr.mxu0 0.0
    %374 = vmatpush1.msra.mxu0 0.0
    %375 = vmatprep.subr.mxu0 0.0
    %376 = vmatpush1.msra.mxu0 0.0
    %377 = vmatprep.subr.mxu0 0.0
    %378 = vmatpush1.msra.mxu0 0.0
    %379 = vmatprep.subr.mxu0 0.0
    %380 = vmatpush1.msra.mxu0 0.0
    %381 = vmatprep.subr.mxu0 0.0
    %382 = vmatpush1.msra.mxu0 0.0
    %383 = vmatprep.subr.mxu0 0.0
    %384 = vmatpush1.msra.mxu0 0.0
    %385 = vmatprep.subr.mxu0 0.0
    %386 = vmatpush1.msra.mxu0 %v350
    %387 = vmatprep.subr.mxu0 0.0
    %388 = vmatpush1.msra.mxu0 %v349
    %389 = vmatprep.subr.mxu0 0.0
    %390 = vmatpush1.msra.mxu0 %v348
    %391 = vmatprep.subr.mxu0 0.0
    %392 = vmatpush1.msra.mxu0 %v347
    %393 = vmatprep.subr.mxu0 0.0
    %394 = vmatpush2.msra.mxu0 0.0
    %395 = vmatprep.subr.mxu0 0.0
    %396 = vmatpush2.msra.mxu0 0.0
    %397 = vmatprep.subr.mxu0 0.0
    %398 = vmatpush2.msra.mxu0 0.0
    %399 = vmatprep.subr.mxu0 0.0
    %400 = vmatpush2.msra.mxu0 0.0
    %401 = vmatprep.subr.mxu0 0.0
    %402 = vmatpush2.msra.mxu0 0.0
    %403 = vmatprep.subr.mxu0 0.0
    %404 = vmatpush2.msra.mxu0 0.0
    %405 = vmatprep.subr.mxu0 0.0
    %406 = vmatpush2.msra.mxu0 0.0
    %407 = vmatprep.subr.mxu0 0.0
    %408 = vmatpush2.msra.mxu0 0.0
    %409 = vmatprep.subr.mxu0 0.0
    %410 = vmatpush2.msra.mxu0 0.0
    %411 = vmatprep.subr.mxu0 0.0
    %412 = vmatpush2.msra.mxu0 0.0
    %413 = vmatprep.subr.mxu0 0.0
    %414 = vmatpush2.msra.mxu0 0.0
    %415 = vmatprep.subr.mxu0 0.0
    %416 = vmatpush2.msra.mxu0 0.0
    %417 = vmatprep.subr.mxu0 0.0
    %418 = vmatpush2.msra.mxu0 0.0
    %419 = vmatprep.subr.mxu0 0.0
    %420 = vmatpush2.msra.mxu0 0.0
    %421 = vmatprep.subr.mxu0 0.0
    %422 = vmatpush2.msra.mxu0 0.0
    %423 = vmatprep.subr.mxu0 0.0
    %424 = vmatpush2.msra.mxu0 0.0
    %425 = vmatprep.mubr.f32.mxu0 0.0
    %426 = vmatmul.mubr.f32.gmra.mxu0 %v359
    %v427 = vpop.f32.mrf.mxu0
    %v428 = vadd.f32 %v356, %v427
    %v429 = vpop.f32.mrf.mxu0
    %430 = vdwg.mxu0
    %v431 = vmul.f32 %v428, %v428
    %v432 = vrot.slane %v431, 4
    %v433 = vadd.f32 %v431, %v432
    %v434 = vrot.slane %v433, 2
    %v435 = vadd.f32 %v433, %v434
    %v436 = vrot.slane %v435, 1
    %v437 = vadd.f32 %v435, %v436
    %v438 = vmax.f32 %v437, 1e-24
    %v439 = vrsqrt.pop %v438
    %v440 = vmul.f32 %v428, %v439
    %441 = vst [vmem:[#allocation2] sm:$0xff] %v440
    // Predicated region
    $region30: #{tpu_custom_call.1} parent=1 // pred_check
      _
    $region31: #{tpu_custom_call.1} parent=1 // pred_check_branch
      %443 = sbr.rel (0) target = $region33
    $region32: #{tpu_custom_call.1} parent=1 // pred_region
      %s445 = ssub.s32 128, 128
      %446 = vsyncadd [#allocation3], %s445
      %s448 = sshll.u32 [#allocation2], 4
      %s449 = int_to_ptr.vmem [resolvable:$true] %s448
      %451 = dma.vmem_to_hbm [thread:$0]  %s449, 128, %s7, [#allocation3]
    $region33: #{tpu_custom_call.1} parent=1 // pred_fallthru
      _
    // Predicated region
    $region34: #{tpu_custom_call.1} parent=1 // pred_check
      _
    $region35: #{tpu_custom_call.1} parent=1 // pred_check_branch
      %453 = sbr.rel (0) target = $region37
    $region36: #{tpu_custom_call.1} parent=1 // pred_region
      %454 = dma.done [#allocation3], 128
    $region37: #{tpu_custom_call.1} parent=1 // pred_fallthru
      _
    %455 = vsyncpa [#allocation3], 1

</llo_original>
